<compile_context>
chip_gen: v7x
topology: tpu7x:2x2x1
jax: 0.10.0
libtpu: 0.0.40
codegen_flags: <defaults>
</compile_context>

<pallas_src>
import jax
import jax.numpy as jnp
from jax.experimental import pallas as pl
from jax.experimental.pallas import tpu as pltpu

# ----- Model hyper-parameters (small, consistent with the module) -----
FILTER_SIZES = (1, 2, 3, 4, 5)
NUM_FILTERS = 16
EMB_SIZE = 128            # module default is 200; production checkpoints should be
                          # zero-padded to 256 lanes, never truncated.
SEQ = 8
BATCH = 16
VOCAB = 64
NUM_FS = len(FILTER_SIZES)
FEAT = NUM_FS * NUM_FILTERS            # 80  (FC input width)
MAX_FS = max(FILTER_SIZES)             # 5 time offsets
PAD = 128                              # lane-padded feature width (one full vreg)
PACK_COLS = MAX_FS * PAD               # 640 packed weight columns (5 vregs, lane-dense)

# Single grid step at this size; re-tile the batch (>=128 rows per core) and mark the
# axis "parallel" only at much larger B (e.g. to use v7x's second TensorCore).
BATCH_TILE = BATCH


def netcnn_kernel(x_ref, w_ref, p_ref, out_ref):
    """Whole forward pass for one batch tile.

      x_ref   : (BB, S, E)          bf16  embedded tokens
      w_ref   : (E, MAX_FS*PAD)     bf16  offset-packed conv weights; lane block j
                                          holds W_fs[j].T for every fs > j (else 0)
      p_ref   : (3, PAD)            f32   row 0: conv biases (padded with zeros)
                                          row 1: FC weight   (padded with zeros)
                                          row 2: [fc_bias, 0, ...]
      out_ref : (BB, 1)             f32   sigmoid probabilities
    """
    BB, S, E = x_ref.shape

    # One lane-dense MXU matmul for every (time offset, filter size) block at once.
    y = jnp.dot(x_ref[...].reshape(BB * S, E), w_ref[...],
                preferred_element_type=jnp.float32)            # (BB*S, MAX_FS*PAD) f32
    y = y.reshape(BB, S, PACK_COLS)

    # conv_out[b, t, :] = sum_j x[b, t+j] @ W[j]:  take offset-block j (a vreg-aligned
    # 128-lane slice), rotate it by -j along time (XLU), and add (full-vreg VPU).
    # Circularly wrapped rows only ever land on time-invalid rows, masked below.
    acc = y[:, :, 0:PAD]
    for j in range(1, MAX_FS):
        acc = acc + pltpu.roll(y[:, :, j * PAD:(j + 1) * PAD], shift=S - j, axis=1)

    # Bias + ReLU (single full-width f32 pass).
    acc = jnp.maximum(acc + p_ref[0:1, :], 0.0)                # (BB, S, PAD)

    # Zero out time-invalid rows and padded columns (safe post-ReLU: values >= 0),
    # then max over the time axis.
    t_idx = jax.lax.broadcasted_iota(jnp.int32, (1, S, PAD), 1)
    c_idx = jax.lax.broadcasted_iota(jnp.int32, (1, S, PAD), 2)
    fs_col = jnp.zeros((1, S, PAD), jnp.int32)
    for k, fs in enumerate(FILTER_SIZES):
        in_blk = (c_idx >= k * NUM_FILTERS) & (c_idx < (k + 1) * NUM_FILTERS)
        fs_col = jnp.where(in_blk, fs, fs_col)
    valid = (t_idx <= S - fs_col) & (c_idx < FEAT)
    pooled = jnp.max(jnp.where(valid, acc, 0.0), axis=1)       # (BB, PAD)

    # dropout: identity in eval mode (module stores a float, not an nn.Dropout)
    # FC against the zero-padded 128-wide weight row, then sigmoid.
    logits = (jnp.sum(pooled * p_ref[1:2, :], axis=1, keepdims=True)
              + p_ref[2:3, 0:1])
    out_ref[...] = jax.nn.sigmoid(logits)


def pack_conv_weights(conv_ws):
    """(fs*E, F) per filter size  ->  (E, MAX_FS*PAD) offset-packed, lane-dense.

    Lane block j (columns j*PAD .. j*PAD+127): sub-block k*F..(k+1)*F-1 holds
    conv_ws[k][j*E:(j+1)*E, :] when j < FILTER_SIZES[k], zeros otherwise; columns
    FEAT..PAD-1 are zero padding.
    """
    w_all = jnp.zeros((EMB_SIZE, PACK_COLS), jnp.float32)
    for j in range(MAX_FS):
        for k, fs in enumerate(FILTER_SIZES):
            if j < fs:
                blk = conv_ws[k][j * EMB_SIZE:(j + 1) * EMB_SIZE, :]       # (E, F)
                lo = j * PAD + k * NUM_FILTERS
                w_all = w_all.at[:, lo:lo + NUM_FILTERS].set(blk)
    return w_all


def pack_params(conv_bs, fc_w, fc_b):
    """Merge conv biases + FC weight + FC bias into one (3, PAD) f32 array."""
    b_cat = jnp.concatenate(conv_bs, axis=1)                   # (1, FEAT)
    p = jnp.zeros((3, PAD), jnp.float32)
    p = p.at[0, :FEAT].set(b_cat[0])
    p = p.at[1, :FEAT].set(fc_w[0])
    p = p.at[2, 0].set(fc_b[0, 0])
    return p


def netcnn_forward(tokens, emb_matrix, conv_ws, conv_bs, fc_w, fc_b):
    # Embedding lookup (gather) is plain-JAX glue; emb weights are frozen
    # (emb_tune=False) so this mirrors nn.Embedding at inference.
    # TODO(synk): at production shapes, fuse this gather into the kernel
    # (tokens via scalar prefetch + emb_matrix in pl.ANY with a DMA row gather)
    # to remove one full (B,S,E) HBM round trip and one launch.
    x = emb_matrix[tokens].astype(jnp.bfloat16)                # (B, S, E) bf16 at MXU
    w_all = pack_conv_weights(conv_ws).astype(jnp.bfloat16)    # (E, PACK_COLS) bf16
    params = pack_params(conv_bs, fc_w, fc_b)                  # (3, PAD) f32

    B = tokens.shape[0]
    assert B % BATCH_TILE == 0
    grid = (B // BATCH_TILE,)
    # Single step at this size; batch-parallel split only pays off with >=128 rows/core.
    semantics = ("arbitrary",) if grid[0] == 1 else ("parallel",)

    out_shape = jax.ShapeDtypeStruct((B, 1), jnp.float32)
    return pl.pallas_call(
        netcnn_kernel,
        out_shape=out_shape,
        grid_spec=pltpu.PrefetchScalarGridSpec(
            num_scalar_prefetch=0,
            grid=grid,
            in_specs=[
                pl.BlockSpec((BATCH_TILE, SEQ, EMB_SIZE), lambda i: (i, 0, 0)),
                pl.BlockSpec((EMB_SIZE, PACK_COLS), lambda i: (0, 0)),
                pl.BlockSpec((3, PAD), lambda i: (0, 0)),
            ],
            out_specs=pl.BlockSpec((BATCH_TILE, 1), lambda i: (i, 0)),
        ),
        compiler_params=pltpu.CompilerParams(
            dimension_semantics=semantics,
        ),
    )(x, w_all, params)


def ref_forward(tokens, emb_matrix, conv_ws, conv_bs, fc_w, fc_b):
    """Pure-JAX f32 reference with the same intended semantics."""
    x = emb_matrix[tokens].astype(jnp.float32)
    pooled = []
    for fs, w, b in zip(FILTER_SIZES, conv_ws, conv_bs):
        T = SEQ - fs + 1
        acc = jnp.zeros((tokens.shape[0], T, NUM_FILTERS), jnp.float32)
        for j in range(fs):
            acc = acc + jnp.einsum(
                "bte,ef->btf", x[:, j:j + T, :],
                w[j * EMB_SIZE:(j + 1) * EMB_SIZE, :])
        acc = jnp.maximum(acc + b[0], 0.0)
        pooled.append(jnp.max(acc, axis=1))
    feat = jnp.concatenate(pooled, axis=1)
    return jax.nn.sigmoid(jnp.sum(feat * fc_w, axis=1, keepdims=True) + fc_b)


if __name__ == "__main__":
    key = jax.random.PRNGKey(0)
    k_emb, k_tok, k_fc_w, k_fc_b, *k_conv = jax.random.split(key, 4 + 2 * NUM_FS)

    # Deterministic synthetic parameters (shapes implied by the module __init__).
    emb_matrix = jax.random.normal(k_emb, (VOCAB, EMB_SIZE), jnp.float32) * 0.1
    tokens = jax.random.randint(k_tok, (BATCH, SEQ), 0, VOCAB, dtype=jnp.int32)

    conv_ws, conv_bs = [], []
    for i, fs in enumerate(FILTER_SIZES):
        # PyTorch Conv2d weight (F, 1, fs, E) flattened+transposed -> (fs*E, F)
        w = jax.random.normal(k_conv[2 * i], (fs * EMB_SIZE, NUM_FILTERS), jnp.float32) * 0.05
        b = jax.random.normal(k_conv[2 * i + 1], (1, NUM_FILTERS), jnp.float32) * 0.05
        conv_ws.append(w)
        conv_bs.append(b)

    fc_w = jax.random.normal(k_fc_w, (1, FEAT), jnp.float32) * 0.05
    fc_b = jax.random.normal(k_fc_b, (1, 1), jnp.float32) * 0.05

    out = jax.block_until_ready(
        netcnn_forward(tokens, emb_matrix, conv_ws, conv_bs, fc_w, fc_b))
    ref = jax.block_until_ready(
        ref_forward(tokens, emb_matrix, conv_ws, conv_bs, fc_w, fc_b))

    assert out.shape == (BATCH, 1)
    # bf16 MXU inputs vs. an all-f32 reference -> tolerance slightly above f32-exact.
    assert jnp.allclose(out, ref, atol=5e-3, rtol=5e-3), (out, ref)

    print("KERNEL_OK")
</pallas_src>

<mosaic_0001>
module attributes {stable_mosaic.version = 11 : i64} {
  func.func @netcnn_kernel(%arg0: i32, %arg1: memref<16x8x128xbf16, #tpu.memory_space<vmem>>, %arg2: memref<128x640xbf16, #tpu.memory_space<vmem>>, %arg3: memref<3x128xf32, #tpu.memory_space<vmem>>, %arg4: memref<16x1xf32, #tpu.memory_space<vmem>>) attributes {dimension_semantics = [#tpu.dimension_semantics<arbitrary>], iteration_bounds = array<i64: 1>, scalar_prefetch = 0 : i64, scratch_operands = 0 : i64, tpu.core_type = #tpu.core_type<tc>, window_params = [{transform_indices = @transform_0, window_bounds = array<i64: 16, 8, 128>}, {pipeline_mode = #tpu.pipeline_mode<synchronous>, transform_indices = @transform_1, window_bounds = array<i64: 128, 640>}, {pipeline_mode = #tpu.pipeline_mode<synchronous>, transform_indices = @transform_2, window_bounds = array<i64: 3, 128>}, {transform_indices = @transform_3, window_bounds = array<i64: 16, 1>}]} {
    %c0 = arith.constant 0 : index
    %c0_0 = arith.constant 0 : index
    %c0_1 = arith.constant 0 : index
    %0 = vector.load %arg1[%c0, %c0_0, %c0_1] : memref<16x8x128xbf16, #tpu.memory_space<vmem>>, vector<16x8x128xbf16>
    %1 = vector.shape_cast %0 : vector<16x8x128xbf16> to vector<128x128xbf16>
    %c0_2 = arith.constant 0 : index
    %c0_3 = arith.constant 0 : index
    %2 = vector.load %arg2[%c0_2, %c0_3] : memref<128x640xbf16, #tpu.memory_space<vmem>>, vector<128x640xbf16>
    %cst = arith.constant dense<0.000000e+00> : vector<128x640xf32>
    %3 = tpu.matmul %1, %2, %cst {dimension_numbers = #tpu.dot_dimension_numbers<[1], [0], [0], [1], [0, 0, 1, 1], [], []>} : vector<128x128xbf16>, vector<128x640xbf16>, vector<128x640xf32> -> vector<128x640xf32>
    %4 = vector.shape_cast %3 : vector<128x640xf32> to vector<16x8x640xf32>
    %5 = vector.extract_strided_slice %4 {offsets = [0, 0, 0], sizes = [16, 8, 128], strides = [1, 1, 1]} : vector<16x8x640xf32> to vector<16x8x128xf32>
    %6 = vector.extract_strided_slice %4 {offsets = [0, 0, 128], sizes = [16, 8, 128], strides = [1, 1, 1]} : vector<16x8x640xf32> to vector<16x8x128xf32>
    %c7_i32 = arith.constant 7 : i32
    %7 = tpu.dynamic_rotate %6 by %c7_i32 dim 1 : vector<16x8x128xf32>, i32 -> vector<16x8x128xf32>
    %8 = arith.addf %5, %7 : vector<16x8x128xf32>
    %9 = vector.extract_strided_slice %4 {offsets = [0, 0, 256], sizes = [16, 8, 128], strides = [1, 1, 1]} : vector<16x8x640xf32> to vector<16x8x128xf32>
    %c6_i32 = arith.constant 6 : i32
    %10 = tpu.dynamic_rotate %9 by %c6_i32 dim 1 : vector<16x8x128xf32>, i32 -> vector<16x8x128xf32>
    %11 = arith.addf %8, %10 : vector<16x8x128xf32>
    %12 = vector.extract_strided_slice %4 {offsets = [0, 0, 384], sizes = [16, 8, 128], strides = [1, 1, 1]} : vector<16x8x640xf32> to vector<16x8x128xf32>
    %c5_i32 = arith.constant 5 : i32
    %13 = tpu.dynamic_rotate %12 by %c5_i32 dim 1 : vector<16x8x128xf32>, i32 -> vector<16x8x128xf32>
    %14 = arith.addf %11, %13 : vector<16x8x128xf32>
    %15 = vector.extract_strided_slice %4 {offsets = [0, 0, 512], sizes = [16, 8, 128], strides = [1, 1, 1]} : vector<16x8x640xf32> to vector<16x8x128xf32>
    %c4_i32 = arith.constant 4 : i32
    %16 = tpu.dynamic_rotate %15 by %c4_i32 dim 1 : vector<16x8x128xf32>, i32 -> vector<16x8x128xf32>
    %17 = arith.addf %14, %16 : vector<16x8x128xf32>
    %c0_4 = arith.constant 0 : index
    %c0_5 = arith.constant 0 : index
    %18 = vector.load %arg3[%c0_4, %c0_5] : memref<3x128xf32, #tpu.memory_space<vmem>>, vector<1x128xf32>
    %19 = vector.shape_cast %18 : vector<1x128xf32> to vector<1x1x128xf32>
    %20 = vector.broadcast %19 : vector<1x1x128xf32> to vector<16x8x128xf32>
    %21 = arith.addf %17, %20 : vector<16x8x128xf32>
    %cst_6 = arith.constant 0.000000e+00 : f32
    %22 = vector.broadcast %cst_6 : f32 to vector<16x8x128xf32>
    %23 = arith.maximumf %21, %22 : vector<16x8x128xf32>
    %24 = tpu.iota {dimensions = array<i32: 1>} : vector<1x8x128xi32>
    %25 = tpu.iota {dimensions = array<i32: 2>} : vector<1x8x128xi32>
    %c0_i32 = arith.constant 0 : i32
    %26 = vector.broadcast %c0_i32 : i32 to vector<1x8x128xi32>
    %c0_i32_7 = arith.constant 0 : i32
    %27 = vector.broadcast %c0_i32_7 : i32 to vector<1x8x128xi32>
    %28 = arith.cmpi sge, %25, %27 : vector<1x8x128xi32>
    %c16_i32 = arith.constant 16 : i32
    %29 = vector.broadcast %c16_i32 : i32 to vector<1x8x128xi32>
    %30 = arith.cmpi slt, %25, %29 : vector<1x8x128xi32>
    %31 = arith.andi %28, %30 : vector<1x8x128xi1>
    %c1_i32 = arith.constant 1 : i32
    %32 = vector.broadcast %c1_i32 : i32 to vector<1x8x128xi32>
    %33 = arith.select %31, %32, %26 : vector<1x8x128xi1>, vector<1x8x128xi32>
    %c16_i32_8 = arith.constant 16 : i32
    %34 = vector.broadcast %c16_i32_8 : i32 to vector<1x8x128xi32>
    %35 = arith.cmpi sge, %25, %34 : vector<1x8x128xi32>
    %c32_i32 = arith.constant 32 : i32
    %36 = vector.broadcast %c32_i32 : i32 to vector<1x8x128xi32>
    %37 = arith.cmpi slt, %25, %36 : vector<1x8x128xi32>
    %38 = arith.andi %35, %37 : vector<1x8x128xi1>
    %c2_i32 = arith.constant 2 : i32
    %39 = vector.broadcast %c2_i32 : i32 to vector<1x8x128xi32>
    %40 = arith.select %38, %39, %33 : vector<1x8x128xi1>, vector<1x8x128xi32>
    %c32_i32_9 = arith.constant 32 : i32
    %41 = vector.broadcast %c32_i32_9 : i32 to vector<1x8x128xi32>
    %42 = arith.cmpi sge, %25, %41 : vector<1x8x128xi32>
    %c48_i32 = arith.constant 48 : i32
    %43 = vector.broadcast %c48_i32 : i32 to vector<1x8x128xi32>
    %44 = arith.cmpi slt, %25, %43 : vector<1x8x128xi32>
    %45 = arith.andi %42, %44 : vector<1x8x128xi1>
    %c3_i32 = arith.constant 3 : i32
    %46 = vector.broadcast %c3_i32 : i32 to vector<1x8x128xi32>
    %47 = arith.select %45, %46, %40 : vector<1x8x128xi1>, vector<1x8x128xi32>
    %c48_i32_10 = arith.constant 48 : i32
    %48 = vector.broadcast %c48_i32_10 : i32 to vector<1x8x128xi32>
    %49 = arith.cmpi sge, %25, %48 : vector<1x8x128xi32>
    %c64_i32 = arith.constant 64 : i32
    %50 = vector.broadcast %c64_i32 : i32 to vector<1x8x128xi32>
    %51 = arith.cmpi slt, %25, %50 : vector<1x8x128xi32>
    %52 = arith.andi %49, %51 : vector<1x8x128xi1>
    %c4_i32_11 = arith.constant 4 : i32
    %53 = vector.broadcast %c4_i32_11 : i32 to vector<1x8x128xi32>
    %54 = arith.select %52, %53, %47 : vector<1x8x128xi1>, vector<1x8x128xi32>
    %c64_i32_12 = arith.constant 64 : i32
    %55 = vector.broadcast %c64_i32_12 : i32 to vector<1x8x128xi32>
    %56 = arith.cmpi sge, %25, %55 : vector<1x8x128xi32>
    %c80_i32 = arith.constant 80 : i32
    %57 = vector.broadcast %c80_i32 : i32 to vector<1x8x128xi32>
    %58 = arith.cmpi slt, %25, %57 : vector<1x8x128xi32>
    %59 = arith.andi %56, %58 : vector<1x8x128xi1>
    %c5_i32_13 = arith.constant 5 : i32
    %60 = vector.broadcast %c5_i32_13 : i32 to vector<1x8x128xi32>
    %61 = arith.select %59, %60, %54 : vector<1x8x128xi1>, vector<1x8x128xi32>
    %c8_i32 = arith.constant 8 : i32
    %62 = vector.broadcast %c8_i32 : i32 to vector<1x8x128xi32>
    %63 = arith.subi %62, %61 : vector<1x8x128xi32>
    %64 = arith.cmpi sle, %24, %63 : vector<1x8x128xi32>
    %c80_i32_14 = arith.constant 80 : i32
    %65 = vector.broadcast %c80_i32_14 : i32 to vector<1x8x128xi32>
    %66 = arith.cmpi slt, %25, %65 : vector<1x8x128xi32>
    %67 = arith.andi %64, %66 : vector<1x8x128xi1>
    %cst_15 = arith.constant 0.000000e+00 : f32
    %68 = vector.shape_cast %67 : vector<1x8x128xi1> to vector<1x8x128xi1>
    %69 = vector.broadcast %68 : vector<1x8x128xi1> to vector<16x8x128xi1>
    %70 = vector.broadcast %cst_15 : f32 to vector<16x8x128xf32>
    %71 = arith.select %69, %23, %70 : vector<16x8x128xi1>, vector<16x8x128xf32>
    %cst_16 = arith.constant dense<0xFF800000> : vector<16x128xf32>
    %72 = vector.multi_reduction <maximumf>, %71, %cst_16 [1] : vector<16x8x128xf32> to vector<16x128xf32>
    %c1 = arith.constant 1 : index
    %c0_17 = arith.constant 0 : index
    %73 = vector.load %arg3[%c1, %c0_17] : memref<3x128xf32, #tpu.memory_space<vmem>>, vector<1x128xf32>
    %74 = vector.broadcast %73 : vector<1x128xf32> to vector<16x128xf32>
    %75 = arith.mulf %72, %74 : vector<16x128xf32>
    %cst_18 = arith.constant dense<0.000000e+00> : vector<16xf32>
    %76 = vector.multi_reduction <add>, %75, %cst_18 [1] : vector<16x128xf32> to vector<16xf32>
    %77 = vector.shape_cast %76 : vector<16xf32> to vector<16x1xf32>
    %c2 = arith.constant 2 : index
    %c0_19 = arith.constant 0 : index
    %78 = vector.load %arg3[%c2, %c0_19] : memref<3x128xf32, #tpu.memory_space<vmem>>, vector<1x1xf32>
    %79 = vector.broadcast %78 : vector<1x1xf32> to vector<16x1xf32>
    %80 = arith.addf %77, %79 : vector<16x1xf32>
    %81 = arith.negf %80 : vector<16x1xf32>
    %82 = math.exp %81 : vector<16x1xf32>
    %cst_20 = arith.constant 1.000000e+00 : f32
    %83 = vector.broadcast %cst_20 : f32 to vector<16x1xf32>
    %84 = arith.addf %83, %82 : vector<16x1xf32>
    %85 = arith.divf %83, %84 : vector<16x1xf32>
    %c0_21 = arith.constant 0 : index
    %c0_22 = arith.constant 0 : index
    %86 = vector.load %arg4[%c0_21, %c0_22] : memref<16x1xf32, #tpu.memory_space<vmem>>, vector<16x1xf32>
    tpu.vector_store %arg4[%c0_21, %c0_22], %85 {strides = array<i32>} : memref<16x1xf32, #tpu.memory_space<vmem>>, vector<16x1xf32>,
    return
  }
  func.func @transform_0(%arg0: i32) -> (i32, i32, i32) {
    %c0_i32 = arith.constant 0 : i32
    %c0_i32_0 = arith.constant 0 : i32
    %c0_i32_1 = arith.constant 0 : i32
    return %arg0, %c0_i32, %c0_i32_0 : i32, i32, i32
  }
  func.func @transform_1(%arg0: i32) -> (i32, i32) {
    %c0_i32 = arith.constant 0 : i32
    %c0_i32_0 = arith.constant 0 : i32
    %c0_i32_1 = arith.constant 0 : i32
    return %c0_i32, %c0_i32_0 : i32, i32
  }
  func.func @transform_2(%arg0: i32) -> (i32, i32) {
    %c0_i32 = arith.constant 0 : i32
    %c0_i32_0 = arith.constant 0 : i32
    %c0_i32_1 = arith.constant 0 : i32
    return %c0_i32, %c0_i32_0 : i32, i32
  }
  func.func @transform_3(%arg0: i32) -> (i32, i32) {
    %c0_i32 = arith.constant 0 : i32
    %c0_i32_0 = arith.constant 0 : i32
    return %arg0, %c0_i32 : i32, i32
  }
}

</mosaic_0001>

<llo_original>
// kernel: tpu_custom_call.1
$region0: #{tpu_custom_call.1}
  #allocation0 [shape = 'u32[]', space=smem, size = 0x4, offset = 0x4, fixed_abs, tag = 'smem constant byte address 0x4 - core index']
  #allocation1 [shape = 'u32[144,128]{1,0:T(1,128)}', space=vmem, size = 0x12000, scoped, tag = 'internal scratch']
  %s0 = inlined_call_operand.hbm [shape: bf16[16,8,128], index: 0, kind: input, shape index: {}]
  %s1 = inlined_call_operand.hbm [shape: bf16[128,640], index: 1, kind: input, shape index: {}]
  %s2 = inlined_call_operand.vmem [shape: f32[3,128], index: 2, kind: input, shape index: {}]
  %s3 = inlined_call_operand.vmem [shape: f32[16,1], index: 3, kind: output, shape index: {}]
  %s4 = sld [smem:[#allocation0]]
  $region30: #{tpu_custom_call.1} parent=0
    _
  %s6 = ssub.s32 1, %s4
  %s7 = scalar_select 0, %s6, %s4
  $region1: #{tpu_custom_call.1} parent=0
    #allocation2 [shape = 'u8[32768]{0}', space=vmem, size = 0x8000, scoped, tag = 'input window, operand 0, single buffered']
    #allocation3 [shape = 's32[1]{0}', space=sflag, size = 0x4, scoped, tag = 'scoped memory for tpu_custom_call.1']
    #allocation4 [shape = 'u8[163840]{0}', space=vmem, size = 0x28000, scoped, tag = 'input window, operand 1, single buffered']
    #allocation5 [shape = 's32[1]{0}', space=sflag, size = 0x4, scoped, tag = 'scoped memory for tpu_custom_call.1']
    %8 = vsyncpa [#allocation3], 0
    %9 = vsyncpa [#allocation5], 0
    // Predicated region
    $region2: #{tpu_custom_call.1} parent=1 // pred_check
      _
    $region3: #{tpu_custom_call.1} parent=1 // pred_check_branch
      %11 = sbr.rel (0) target = $region5
    $region4: #{tpu_custom_call.1} parent=1 // pred_region
      %s13 = ssub.s32 1024, 1024
      %14 = vsyncadd [#allocation3], %s13
      %s15 = sshll.u32 [#allocation2], 4
      %s16 = int_to_ptr.vmem [resolvable:$true] %s15
      %21 = dma.hbm_to_vmem [thread:$0]  %s0, 1024, %s16, [#allocation3], 64, 64, 4
    $region5: #{tpu_custom_call.1} parent=1 // pred_fallthru
      _
    // Predicated region
    $region6: #{tpu_custom_call.1} parent=1 // pred_check
      _
    $region7: #{tpu_custom_call.1} parent=1 // pred_check_branch
      %23 = sbr.rel (0) target = $region9
    $region8: #{tpu_custom_call.1} parent=1 // pred_region
      %s25 = ssub.s32 5120, 5120
      %26 = vsyncadd [#allocation5], %s25
      %s27 = sshll.u32 [#allocation4], 4
      %s28 = int_to_ptr.vmem [resolvable:$true] %s27
      %33 = dma.hbm_to_vmem [thread:$0]  %s1, 5120, %s28, [#allocation5], 320, 320, 20
    $region9: #{tpu_custom_call.1} parent=1 // pred_fallthru
      _
    // Predicated region
    $region10: #{tpu_custom_call.1} parent=1 // pred_check
      _
    $region11: #{tpu_custom_call.1} parent=1 // pred_check_branch
      %35 = sbr.rel (0) target = $region13
    $region12: #{tpu_custom_call.1} parent=1 // pred_region
      _
    $region13: #{tpu_custom_call.1} parent=1 // pred_fallthru
      _
    // Predicated region
    $region14: #{tpu_custom_call.1} parent=1 // pred_check
      _
    $region15: #{tpu_custom_call.1} parent=1 // pred_check_branch
      %37 = sbr.rel (0) target = $region17
    $region16: #{tpu_custom_call.1} parent=1 // pred_region
      %38 = dma.done [#allocation3], 1024
    $region17: #{tpu_custom_call.1} parent=1 // pred_fallthru
      _
    // Predicated region
    $region18: #{tpu_custom_call.1} parent=1 // pred_check
      _
    $region19: #{tpu_custom_call.1} parent=1 // pred_check_branch
      %40 = sbr.rel (0) target = $region21
    $region20: #{tpu_custom_call.1} parent=1 // pred_region
      %41 = dma.done [#allocation5], 5120
    $region21: #{tpu_custom_call.1} parent=1 // pred_fallthru
      _
    %v43 = vld [vmem:[#allocation2] sm:$0xf]
    %v44 = vld [vmem:[#allocation2 + $0x4] sm:$0xf]
    %v45 = vld [vmem:[#allocation2 + $0x8] sm:$0xf]
    %v46 = vld [vmem:[#allocation2 + $0xc] sm:$0xf]
    %v47 = vld [vmem:[#allocation2 + $0x10] sm:$0xf]
    %v48 = vld [vmem:[#allocation2 + $0x14] sm:$0xf]
    %v49 = vld [vmem:[#allocation2 + $0x18] sm:$0xf]
    %v50 = vld [vmem:[#allocation2 + $0x1c] sm:$0xf]
    %v51 = vld [vmem:[#allocation2 + $0x20] sm:$0xf]
    %v52 = vld [vmem:[#allocation2 + $0x24] sm:$0xf]
    %v53 = vld [vmem:[#allocation2 + $0x28] sm:$0xf]
    %v54 = vld [vmem:[#allocation2 + $0x2c] sm:$0xf]
    %v55 = vld [vmem:[#allocation2 + $0x30] sm:$0xf]
    %v56 = vld [vmem:[#allocation2 + $0x34] sm:$0xf]
    %v57 = vld [vmem:[#allocation2 + $0x38] sm:$0xf]
    %v58 = vld [vmem:[#allocation2 + $0x3c] sm:$0xf]
    %v59 = vld [vmem:[#allocation4] sm:$0xff]
    %v60 = vld [vmem:[#allocation4 + $0x8] sm:$0xff]
    %v61 = vld [vmem:[#allocation4 + $0x10] sm:$0xf]
    %v62 = vld [vmem:[#allocation4 + $0x14] sm:$0xff]
    %v63 = vld [vmem:[#allocation4 + $0x1c] sm:$0xff]
    %v64 = vld [vmem:[#allocation4 + $0x24] sm:$0xf]
    %v65 = vld [vmem:[#allocation4 + $0x28] sm:$0xff]
    %v66 = vld [vmem:[#allocation4 + $0x30] sm:$0xff]
    %v67 = vld [vmem:[#allocation4 + $0x38] sm:$0xf]
    %v68 = vld [vmem:[#allocation4 + $0x3c] sm:$0xff]
    %v69 = vld [vmem:[#allocation4 + $0x44] sm:$0xff]
    %v70 = vld [vmem:[#allocation4 + $0x4c] sm:$0xf]
    %v71 = vld [vmem:[#allocation4 + $0x50] sm:$0xff]
    %v72 = vld [vmem:[#allocation4 + $0x58] sm:$0xff]
    %v73 = vld [vmem:[#allocation4 + $0x60] sm:$0xf]
    %v74 = vld [vmem:[#allocation4 + $0x64] sm:$0xff]
    %v75 = vld [vmem:[#allocation4 + $0x6c] sm:$0xff]
    %v76 = vld [vmem:[#allocation4 + $0x74] sm:$0xf]
    %v77 = vld [vmem:[#allocation4 + $0x78] sm:$0xff]
    %v78 = vld [vmem:[#allocation4 + $0x80] sm:$0xff]
    %v79 = vld [vmem:[#allocation4 + $0x88] sm:$0xf]
    %v80 = vld [vmem:[#allocation4 + $0x8c] sm:$0xff]
    %v81 = vld [vmem:[#allocation4 + $0x94] sm:$0xff]
    %v82 = vld [vmem:[#allocation4 + $0x9c] sm:$0xf]
    %v83 = vld [vmem:[#allocation4 + $0xa0] sm:$0xff]
    %v84 = vld [vmem:[#allocation4 + $0xa8] sm:$0xff]
    %v85 = vld [vmem:[#allocation4 + $0xb0] sm:$0xf]
    %v86 = vld [vmem:[#allocation4 + $0xb4] sm:$0xff]
    %v87 = vld [vmem:[#allocation4 + $0xbc] sm:$0xff]
    %v88 = vld [vmem:[#allocation4 + $0xc4] sm:$0xf]
    %v89 = vld [vmem:[#allocation4 + $0xc8] sm:$0xff]
    %v90 = vld [vmem:[#allocation4 + $0xd0] sm:$0xff]
    %v91 = vld [vmem:[#allocation4 + $0xd8] sm:$0xf]
    %v92 = vld [vmem:[#allocation4 + $0xdc] sm:$0xff]
    %v93 = vld [vmem:[#allocation4 + $0xe4] sm:$0xff]
    %v94 = vld [vmem:[#allocation4 + $0xec] sm:$0xf]
    %v95 = vld [vmem:[#allocation4 + $0xf0] sm:$0xff]
    %v96 = vld [vmem:[#allocation4 + $0xf8] sm:$0xff]
    %v97 = vld [vmem:[#allocation4 + $0x100] sm:$0xf]
    %v98 = vld [vmem:[#allocation4 + $0x104] sm:$0xff]
    %v99 = vld [vmem:[#allocation4 + $0x10c] sm:$0xff]
    %v100 = vld [vmem:[#allocation4 + $0x114] sm:$0xf]
    %v101 = vld [vmem:[#allocation4 + $0x118] sm:$0xff]
    %v102 = vld [vmem:[#allocation4 + $0x120] sm:$0xff]
    %v103 = vld [vmem:[#allocation4 + $0x128] sm:$0xf]
    %v104 = vld [vmem:[#allocation4 + $0x12c] sm:$0xff]
    %v105 = vld [vmem:[#allocation4 + $0x134] sm:$0xff]
    %v106 = vld [vmem:[#allocation4 + $0x13c] sm:$0xf]
    %v123 = vunpack.c.l.b16 %v43
    %v124 = vunpack.c.l.b16 %v44
    %v125 = vunpack.c.l.b16 %v45
    %v126 = vunpack.c.l.b16 %v46
    %v127 = vunpack.c.l.b16 %v47
    %v128 = vunpack.c.l.b16 %v48
    %v129 = vunpack.c.l.b16 %v49
    %v130 = vunpack.c.l.b16 %v50
    %v131 = vunpack.c.l.b16 %v51
    %v132 = vunpack.c.l.b16 %v52
    %v133 = vunpack.c.l.b16 %v53
    %v134 = vunpack.c.l.b16 %v54
    %v135 = vunpack.c.l.b16 %v55
    %v136 = vunpack.c.l.b16 %v56
    %v137 = vunpack.c.l.b16 %v57
    %v138 = vunpack.c.l.b16 %v58
    %v139 = vpack.c.b16 %v124, %v123
    %v140 = vpack.c.b16 %v126, %v125
    %v141 = vpack.c.b16 %v128, %v127
    %v142 = vpack.c.b16 %v130, %v129
    %v143 = vpack.c.b16 %v132, %v131
    %v144 = vpack.c.b16 %v134, %v133
    %v145 = vpack.c.b16 %v136, %v135
    %v146 = vpack.c.b16 %v138, %v137
    %v203 = vunpack.c.l.b16 %v59
    %v204 = vunpack.c.h.b16 %v59
    %v205 = vunpack.c.l.b16 %v60
    %v206 = vunpack.c.h.b16 %v60
    %v207 = vunpack.c.l.b16 %v61
    %v208 = vunpack.c.l.b16 %v62
    %v209 = vunpack.c.h.b16 %v62
    %v210 = vunpack.c.l.b16 %v63
    %v211 = vunpack.c.h.b16 %v63
    %v212 = vunpack.c.l.b16 %v64
    %v213 = vunpack.c.l.b16 %v65
    %v214 = vunpack.c.h.b16 %v65
    %v215 = vunpack.c.l.b16 %v66
    %v216 = vunpack.c.h.b16 %v66
    %v217 = vunpack.c.l.b16 %v67
    %v218 = vunpack.c.l.b16 %v68
    %v219 = vunpack.c.h.b16 %v68
    %v220 = vunpack.c.l.b16 %v69
    %v221 = vunpack.c.h.b16 %v69
    %v222 = vunpack.c.l.b16 %v70
    %v223 = vunpack.c.l.b16 %v71
    %v224 = vunpack.c.h.b16 %v71
    %v225 = vunpack.c.l.b16 %v72
    %v226 = vunpack.c.h.b16 %v72
    %v227 = vunpack.c.l.b16 %v73
    %v228 = vunpack.c.l.b16 %v74
    %v229 = vunpack.c.h.b16 %v74
    %v230 = vunpack.c.l.b16 %v75
    %v231 = vunpack.c.h.b16 %v75
    %v232 = vunpack.c.l.b16 %v76
    %v233 = vunpack.c.l.b16 %v77
    %v234 = vunpack.c.h.b16 %v77
    %v235 = vunpack.c.l.b16 %v78
    %v236 = vunpack.c.h.b16 %v78
    %v237 = vunpack.c.l.b16 %v79
    %v238 = vunpack.c.l.b16 %v80
    %v239 = vunpack.c.h.b16 %v80
    %v240 = vunpack.c.l.b16 %v81
    %v241 = vunpack.c.h.b16 %v81
    %v242 = vunpack.c.l.b16 %v82
    %v243 = vunpack.c.l.b16 %v83
    %v244 = vunpack.c.h.b16 %v83
    %v245 = vunpack.c.l.b16 %v84
    %v246 = vunpack.c.h.b16 %v84
    %v247 = vunpack.c.l.b16 %v85
    %v248 = vunpack.c.l.b16 %v86
    %v249 = vunpack.c.h.b16 %v86
    %v250 = vunpack.c.l.b16 %v87
    %v251 = vunpack.c.h.b16 %v87
    %v252 = vunpack.c.l.b16 %v88
    %v253 = vunpack.c.l.b16 %v89
    %v254 = vunpack.c.h.b16 %v89
    %v255 = vunpack.c.l.b16 %v90
    %v256 = vunpack.c.h.b16 %v90
    %v257 = vunpack.c.l.b16 %v91
    %v258 = vunpack.c.l.b16 %v92
    %v259 = vunpack.c.h.b16 %v92
    %v260 = vunpack.c.l.b16 %v93
    %v261 = vunpack.c.h.b16 %v93
    %v262 = vunpack.c.l.b16 %v94
    %v263 = vunpack.c.l.b16 %v95
    %v264 = vunpack.c.h.b16 %v95
    %v265 = vunpack.c.l.b16 %v96
    %v266 = vunpack.c.h.b16 %v96
    %v267 = vunpack.c.l.b16 %v97
    %v268 = vunpack.c.l.b16 %v98
    %v269 = vunpack.c.h.b16 %v98
    %v270 = vunpack.c.l.b16 %v99
    %v271 = vunpack.c.h.b16 %v99
    %v272 = vunpack.c.l.b16 %v100
    %v273 = vunpack.c.l.b16 %v101
    %v274 = vunpack.c.h.b16 %v101
    %v275 = vunpack.c.l.b16 %v102
    %v276 = vunpack.c.h.b16 %v102
    %v277 = vunpack.c.l.b16 %v103
    %v278 = vunpack.c.l.b16 %v104
    %v279 = vunpack.c.h.b16 %v104
    %v280 = vunpack.c.l.b16 %v105
    %v281 = vunpack.c.h.b16 %v105
    %v282 = vunpack.c.l.b16 %v106
    %v283 = vpack.c.b16 %v208, %v203
    %v284 = vpack.c.b16 %v209, %v204
    %v285 = vpack.c.b16 %v210, %v205
    %v286 = vpack.c.b16 %v211, %v206
    %v287 = vpack.c.b16 %v212, %v207
    %v288 = vpack.c.b16 %v218, %v213
    %v289 = vpack.c.b16 %v219, %v214
    %v290 = vpack.c.b16 %v220, %v215
    %v291 = vpack.c.b16 %v221, %v216
    %v292 = vpack.c.b16 %v222, %v217
    %v293 = vpack.c.b16 %v228, %v223
    %v294 = vpack.c.b16 %v229, %v224
    %v295 = vpack.c.b16 %v230, %v225
    %v296 = vpack.c.b16 %v231, %v226
    %v297 = vpack.c.b16 %v232, %v227
    %v298 = vpack.c.b16 %v238, %v233
    %v299 = vpack.c.b16 %v239, %v234
    %v300 = vpack.c.b16 %v240, %v235
    %v301 = vpack.c.b16 %v241, %v236
    %v302 = vpack.c.b16 %v242, %v237
    %v303 = vpack.c.b16 %v248, %v243
    %v304 = vpack.c.b16 %v249, %v244
    %v305 = vpack.c.b16 %v250, %v245
    %v306 = vpack.c.b16 %v251, %v246
    %v307 = vpack.c.b16 %v252, %v247
    %v308 = vpack.c.b16 %v258, %v253
    %v309 = vpack.c.b16 %v259, %v254
    %v310 = vpack.c.b16 %v260, %v255
    %v311 = vpack.c.b16 %v261, %v256
    %v312 = vpack.c.b16 %v262, %v257
    %v313 = vpack.c.b16 %v268, %v263
    %v314 = vpack.c.b16 %v269, %v264
    %v315 = vpack.c.b16 %v270, %v265
    %v316 = vpack.c.b16 %v271, %v266
    %v317 = vpack.c.b16 %v272, %v267
    %v318 = vpack.c.b16 %v278, %v273
    %v319 = vpack.c.b16 %v279, %v274
    %v320 = vpack.c.b16 %v280, %v275
    %v321 = vpack.c.b16 %v281, %v276
    %v322 = vpack.c.b16 %v282, %v277
    %363 = vmatprep.subr.bf16.mxu0 %v284
    %364 = vmatpush1.bf16.msra.mxu0 %v283
    %365 = vmatprep.subr.bf16.mxu0 %v289
    %366 = vmatpush1.bf16.msra.mxu0 %v288
    %367 = vmatprep.subr.bf16.mxu0 %v294
    %368 = vmatpush1.bf16.msra.mxu0 %v293
    %369 = vmatprep.subr.bf16.mxu0 %v299
    %370 = vmatpush1.bf16.msra.mxu0 %v298
    %371 = vmatprep.subr.bf16.mxu0 %v304
    %372 = vmatpush1.bf16.msra.mxu0 %v303
    %373 = vmatprep.subr.bf16.mxu0 %v309
    %374 = vmatpush1.bf16.msra.mxu0 %v308
    %375 = vmatprep.subr.bf16.mxu0 %v314
    %376 = vmatpush1.bf16.msra.mxu0 %v313
    %377 = vmatprep.subr.bf16.mxu0 %v319
    %378 = vmatpush1.bf16.msra.mxu0 %v318
    %379 = vmatprep.subr.bf16.mxu0 0
    %380 = vmatpush1.bf16.msra.mxu0 0
    %381 = vmatprep.subr.bf16.mxu0 0
    %382 = vmatpush1.bf16.msra.mxu0 0
    %383 = vmatprep.subr.bf16.mxu0 0
    %384 = vmatpush1.bf16.msra.mxu0 0
    %385 = vmatprep.subr.bf16.mxu0 0
    %386 = vmatpush1.bf16.msra.mxu0 0
    %387 = vmatprep.subr.bf16.mxu0 0
    %388 = vmatpush1.bf16.msra.mxu0 0
    %389 = vmatprep.subr.bf16.mxu0 0
    %390 = vmatpush1.bf16.msra.mxu0 0
    %391 = vmatprep.subr.bf16.mxu0 0
    %392 = vmatpush1.bf16.msra.mxu0 0
    %393 = vmatprep.subr.bf16.mxu0 0
    %394 = vmatpush1.bf16.msra.mxu0 0
    %395 = vmatprep.mubr.bf16.mxu0 0
    %396 = vmatmul.mubr.bf16.gmra.mrb[0].mxu0 %v139
    %v397 = vpop.f32.mrb[0].mxu0
    %v398 = vadd.f32 0.0, %v397
    %v399 = vpop.f32.mrb[0].mxu0
    %v400 = vadd.f32 0.0, %v399
    %v401 = vpop.f32.mrb[0].mxu0
    %v402 = vadd.f32 0.0, %v401
    %v403 = vpop.f32.mrb[0].mxu0
    %v404 = vadd.f32 0.0, %v403
    %405 = vmatprep.mubr.bf16.mxu0 0
    %406 = vmatmul.mubr.bf16.gmra.mrb[0].mxu0 %v140
    %v407 = vpop.f32.mrb[0].mxu0
    %v408 = vadd.f32 0.0, %v407
    %v409 = vpop.f32.mrb[0].mxu0
    %v410 = vadd.f32 0.0, %v409
    %v411 = vpop.f32.mrb[0].mxu0
    %v412 = vadd.f32 0.0, %v411
    %v413 = vpop.f32.mrb[0].mxu0
    %v414 = vadd.f32 0.0, %v413
    %415 = vmatprep.mubr.bf16.mxu0 0
    %416 = vmatmul.mubr.bf16.gmra.mrb[0].mxu0 %v141
    %v417 = vpop.f32.mrb[0].mxu0
    %v418 = vadd.f32 0.0, %v417
    %v419 = vpop.f32.mrb[0].mxu0
    %v420 = vadd.f32 0.0, %v419
    %v421 = vpop.f32.mrb[0].mxu0
    %v422 = vadd.f32 0.0, %v421
    %v423 = vpop.f32.mrb[0].mxu0
    %v424 = vadd.f32 0.0, %v423
    %425 = vmatprep.mubr.bf16.mxu0 0
    %426 = vmatmul.mubr.bf16.gmra.mrb[0].mxu0 %v142
    %v427 = vpop.f32.mrb[0].mxu0
    %v428 = vadd.f32 0.0, %v427
    %v429 = vpop.f32.mrb[0].mxu0
    %v430 = vadd.f32 0.0, %v429
    %v431 = vpop.f32.mrb[0].mxu0
    %v432 = vadd.f32 0.0, %v431
    %v433 = vpop.f32.mrb[0].mxu0
    %v434 = vadd.f32 0.0, %v433
    %435 = vmatprep.mubr.bf16.mxu0 0
    %436 = vmatmul.mubr.bf16.gmra.mrb[0].mxu0 %v143
    %v437 = vpop.f32.mrb[0].mxu0
    %v438 = vadd.f32 0.0, %v437
    %v439 = vpop.f32.mrb[0].mxu0
    %v440 = vadd.f32 0.0, %v439
    %v441 = vpop.f32.mrb[0].mxu0
    %v442 = vadd.f32 0.0, %v441
    %v443 = vpop.f32.mrb[0].mxu0
    %v444 = vadd.f32 0.0, %v443
    %445 = vmatprep.mubr.bf16.mxu0 0
    %446 = vmatmul.mubr.bf16.gmra.mrb[0].mxu0 %v144
    %v447 = vpop.f32.mrb[0].mxu0
    %v448 = vadd.f32 0.0, %v447
    %v449 = vpop.f32.mrb[0].mxu0
    %v450 = vadd.f32 0.0, %v449
    %v451 = vpop.f32.mrb[0].mxu0
    %v452 = vadd.f32 0.0, %v451
    %v453 = vpop.f32.mrb[0].mxu0
    %v454 = vadd.f32 0.0, %v453
    %455 = vmatprep.mubr.bf16.mxu0 0
    %456 = vmatmul.mubr.bf16.gmra.mrb[0].mxu0 %v145
    %v457 = vpop.f32.mrb[0].mxu0
    %v458 = vadd.f32 0.0, %v457
    %v459 = vpop.f32.mrb[0].mxu0
    %v460 = vadd.f32 0.0, %v459
    %v461 = vpop.f32.mrb[0].mxu0
    %v462 = vadd.f32 0.0, %v461
    %v463 = vpop.f32.mrb[0].mxu0
    %v464 = vadd.f32 0.0, %v463
    %465 = vmatprep.mubr.bf16.mxu0 0
    %466 = vmatmul.mubr.bf16.gmra.mrb[0].mxu0 %v146
    %v467 = vpop.f32.mrb[0].mxu0
    %v468 = vadd.f32 0.0, %v467
    %v469 = vpop.f32.mrb[0].mxu0
    %v470 = vadd.f32 0.0, %v469
    %v471 = vpop.f32.mrb[0].mxu0
    %v472 = vadd.f32 0.0, %v471
    %v473 = vpop.f32.mrb[0].mxu0
    %v474 = vadd.f32 0.0, %v473
    %475 = vdwg.mxu0
    %476 = vmatprep.subr.bf16.mxu0 %v286
    %477 = vmatpush1.bf16.msra.mxu0 %v285
    %478 = vmatprep.subr.bf16.mxu0 %v291
    %479 = vmatpush1.bf16.msra.mxu0 %v290
    %480 = vmatprep.subr.bf16.mxu0 %v296
    %481 = vmatpush1.bf16.msra.mxu0 %v295
    %482 = vmatprep.subr.bf16.mxu0 %v301
    %483 = vmatpush1.bf16.msra.mxu0 %v300
    %484 = vmatprep.subr.bf16.mxu0 %v306
    %485 = vmatpush1.bf16.msra.mxu0 %v305
    %486 = vmatprep.subr.bf16.mxu0 %v311
    %487 = vmatpush1.bf16.msra.mxu0 %v310
    %488 = vmatprep.subr.bf16.mxu0 %v316
    %489 = vmatpush1.bf16.msra.mxu0 %v315
    %490 = vmatprep.subr.bf16.mxu0 %v321
    %491 = vmatpush1.bf16.msra.mxu0 %v320
    %492 = vmatprep.subr.bf16.mxu0 0
    %493 = vmatpush1.bf16.msra.mxu0 0
    %494 = vmatprep.subr.bf16.mxu0 0
    %495 = vmatpush1.bf16.msra.mxu0 0
    %496 = vmatprep.subr.bf16.mxu0 0
    %497 = vmatpush1.bf16.msra.mxu0 0
    %498 = vmatprep.subr.bf16.mxu0 0
    %499 = vmatpush1.bf16.msra.mxu0 0
    %500 = vmatprep.subr.bf16.mxu0 0
    %501 = vmatpush1.bf16.msra.mxu0 0
    %502 = vmatprep.subr.bf16.mxu0 0
    %503 = vmatpush1.bf16.msra.mxu0 0
    %504 = vmatprep.subr.bf16.mxu0 0
    %505 = vmatpush1.bf16.msra.mxu0 0
    %506 = vmatprep.subr.bf16.mxu0 0
    %507 = vmatpush1.bf16.msra.mxu0 0
    %508 = vmatprep.mubr.bf16.mxu0 0
    %509 = vmatmul.mubr.bf16.gmra.mrb[0].mxu0 %v139
    %v510 = vpop.f32.mrb[0].mxu0
    %v511 = vadd.f32 0.0, %v510
    %v512 = vpop.f32.mrb[0].mxu0
    %v513 = vadd.f32 0.0, %v512
    %v514 = vpop.f32.mrb[0].mxu0
    %v515 = vadd.f32 0.0, %v514
    %v516 = vpop.f32.mrb[0].mxu0
    %v517 = vadd.f32 0.0, %v516
    %518 = vmatprep.mubr.bf16.mxu0 0
    %519 = vmatmul.mubr.bf16.gmra.mrb[0].mxu0 %v140
    %v520 = vpop.f32.mrb[0].mxu0
    %v521 = vadd.f32 0.0, %v520
    %v522 = vpop.f32.mrb[0].mxu0
    %v523 = vadd.f32 0.0, %v522
    %v524 = vpop.f32.mrb[0].mxu0
    %v525 = vadd.f32 0.0, %v524
    %v526 = vpop.f32.mrb[0].mxu0
    %v527 = vadd.f32 0.0, %v526
    %528 = vmatprep.mubr.bf16.mxu0 0
    %529 = vmatmul.mubr.bf16.gmra.mrb[0].mxu0 %v141
    %v530 = vpop.f32.mrb[0].mxu0
    %v531 = vadd.f32 0.0, %v530
    %v532 = vpop.f32.mrb[0].mxu0
    %v533 = vadd.f32 0.0, %v532
    %v534 = vpop.f32.mrb[0].mxu0
    %v535 = vadd.f32 0.0, %v534
    %v536 = vpop.f32.mrb[0].mxu0
    %v537 = vadd.f32 0.0, %v536
    %538 = vmatprep.mubr.bf16.mxu0 0
    %539 = vmatmul.mubr.bf16.gmra.mrb[0].mxu0 %v142
    %v540 = vpop.f32.mrb[0].mxu0
    %v541 = vadd.f32 0.0, %v540
    %v542 = vpop.f32.mrb[0].mxu0
    %v543 = vadd.f32 0.0, %v542
    %v544 = vpop.f32.mrb[0].mxu0
    %v545 = vadd.f32 0.0, %v544
    %v546 = vpop.f32.mrb[0].mxu0
    %v547 = vadd.f32 0.0, %v546
    %548 = vmatprep.mubr.bf16.mxu0 0
    %549 = vmatmul.mubr.bf16.gmra.mrb[0].mxu0 %v143
    %v550 = vpop.f32.mrb[0].mxu0
    %v551 = vadd.f32 0.0, %v550
    %v552 = vpop.f32.mrb[0].mxu0
    %v553 = vadd.f32 0.0, %v552
    %v554 = vpop.f32.mrb[0].mxu0
    %v555 = vadd.f32 0.0, %v554
    %v556 = vpop.f32.mrb[0].mxu0
    %v557 = vadd.f32 0.0, %v556
    %558 = vmatprep.mubr.bf16.mxu0 0
    %559 = vmatmul.mubr.bf16.gmra.mrb[0].mxu0 %v144
    %v560 = vpop.f32.mrb[0].mxu0
    %v561 = vadd.f32 0.0, %v560
    %v562 = vpop.f32.mrb[0].mxu0
    %v563 = vadd.f32 0.0, %v562
    %v564 = vpop.f32.mrb[0].mxu0
    %v565 = vadd.f32 0.0, %v564
    %v566 = vpop.f32.mrb[0].mxu0
    %v567 = vadd.f32 0.0, %v566
    %568 = vmatprep.mubr.bf16.mxu0 0
    %569 = vmatmul.mubr.bf16.gmra.mrb[0].mxu0 %v145
    %v570 = vpop.f32.mrb[0].mxu0
    %v571 = vadd.f32 0.0, %v570
    %v572 = vpop.f32.mrb[0].mxu0
    %v573 = vadd.f32 0.0, %v572
    %v574 = vpop.f32.mrb[0].mxu0
    %v575 = vadd.f32 0.0, %v574
    %v576 = vpop.f32.mrb[0].mxu0
    %v577 = vadd.f32 0.0, %v576
    %578 = vmatprep.mubr.bf16.mxu0 0
    %579 = vmatmul.mubr.bf16.gmra.mrb[0].mxu0 %v146
    %v580 = vpop.f32.mrb[0].mxu0
    %v581 = vadd.f32 0.0, %v580
    %v582 = vpop.f32.mrb[0].mxu0
    %v583 = vadd.f32 0.0, %v582
    %v584 = vpop.f32.mrb[0].mxu0
    %v585 = vadd.f32 0.0, %v584
    %v586 = vpop.f32.mrb[0].mxu0
    %v587 = vadd.f32 0.0, %v586
    %588 = vdwg.mxu0
    %589 = vmatprep.subr.bf16.mxu0 0
    %590 = vmatpush1.bf16.msra.mxu0 %v287
    %591 = vmatprep.subr.bf16.mxu0 0
    %592 = vmatpush1.bf16.msra.mxu0 %v292
    %593 = vmatprep.subr.bf16.mxu0 0
    %594 = vmatpush1.bf16.msra.mxu0 %v297
    %595 = vmatprep.subr.bf16.mxu0 0
    %596 = vmatpush1.bf16.msra.mxu0 %v302
    %597 = vmatprep.subr.bf16.mxu0 0
    %598 = vmatpush1.bf16.msra.mxu0 %v307
    %599 = vmatprep.subr.bf16.mxu0 0
    %600 = vmatpush1.bf16.msra.mxu0 %v312
    %601 = vmatprep.subr.bf16.mxu0 0
    %602 = vmatpush1.bf16.msra.mxu0 %v317
    %603 = vmatprep.subr.bf16.mxu0 0
    %604 = vmatpush1.bf16.msra.mxu0 %v322
    %605 = vmatprep.subr.bf16.mxu0 0
    %606 = vmatpush1.bf16.msra.mxu0 0
    %607 = vmatprep.subr.bf16.mxu0 0
    %608 = vmatpush1.bf16.msra.mxu0 0
    %609 = vmatprep.subr.bf16.mxu0 0
    %610 = vmatpush1.bf16.msra.mxu0 0
    %611 = vmatprep.subr.bf16.mxu0 0
    %612 = vmatpush1.bf16.msra.mxu0 0
    %613 = vmatprep.subr.bf16.mxu0 0
    %614 = vmatpush1.bf16.msra.mxu0 0
    %615 = vmatprep.subr.bf16.mxu0 0
    %616 = vmatpush1.bf16.msra.mxu0 0
    %617 = vmatprep.subr.bf16.mxu0 0
    %618 = vmatpush1.bf16.msra.mxu0 0
    %619 = vmatprep.subr.bf16.mxu0 0
    %620 = vmatpush1.bf16.msra.mxu0 0
    %621 = vmatprep.mubr.bf16.mxu0 0
    %622 = vmatmul.mubr.bf16.gmra.mrb[0].mxu0 %v139
    %v623 = vpop.f32.mrb[0].mxu0
    %v624 = vadd.f32 0.0, %v623
    %v625 = vpop.f32.mrb[0].mxu0
    %v626 = vpop.f32.mrb[0].mxu0
    %v627 = vadd.f32 0.0, %v626
    %v628 = vpop.f32.mrb[0].mxu0
    %629 = vmatprep.mubr.bf16.mxu0 0
    %630 = vmatmul.mubr.bf16.gmra.mrb[0].mxu0 %v140
    %v631 = vpop.f32.mrb[0].mxu0
    %v632 = vadd.f32 0.0, %v631
    %v633 = vpop.f32.mrb[0].mxu0
    %v634 = vpop.f32.mrb[0].mxu0
    %v635 = vadd.f32 0.0, %v634
    %v636 = vpop.f32.mrb[0].mxu0
    %637 = vmatprep.mubr.bf16.mxu0 0
    %638 = vmatmul.mubr.bf16.gmra.mrb[0].mxu0 %v141
    %v639 = vpop.f32.mrb[0].mxu0
    %v640 = vadd.f32 0.0, %v639
    %v641 = vpop.f32.mrb[0].mxu0
    %v642 = vpop.f32.mrb[0].mxu0
    %v643 = vadd.f32 0.0, %v642
    %v644 = vpop.f32.mrb[0].mxu0
    %645 = vmatprep.mubr.bf16.mxu0 0
    %646 = vmatmul.mubr.bf16.gmra.mrb[0].mxu0 %v142
    %v647 = vpop.f32.mrb[0].mxu0
    %v648 = vadd.f32 0.0, %v647
    %v649 = vpop.f32.mrb[0].mxu0
    %v650 = vpop.f32.mrb[0].mxu0
    %v651 = vadd.f32 0.0, %v650
    %v652 = vpop.f32.mrb[0].mxu0
    %653 = vmatprep.mubr.bf16.mxu0 0
    %654 = vmatmul.mubr.bf16.gmra.mrb[0].mxu0 %v143
    %v655 = vpop.f32.mrb[0].mxu0
    %v656 = vadd.f32 0.0, %v655
    %v657 = vpop.f32.mrb[0].mxu0
    %v658 = vpop.f32.mrb[0].mxu0
    %v659 = vadd.f32 0.0, %v658
    %v660 = vpop.f32.mrb[0].mxu0
    %661 = vmatprep.mubr.bf16.mxu0 0
    %662 = vmatmul.mubr.bf16.gmra.mrb[0].mxu0 %v144
    %v663 = vpop.f32.mrb[0].mxu0
    %v664 = vadd.f32 0.0, %v663
    %v665 = vpop.f32.mrb[0].mxu0
    %v666 = vpop.f32.mrb[0].mxu0
    %v667 = vadd.f32 0.0, %v666
    %v668 = vpop.f32.mrb[0].mxu0
    %669 = vmatprep.mubr.bf16.mxu0 0
    %670 = vmatmul.mubr.bf16.gmra.mrb[0].mxu0 %v145
    %v671 = vpop.f32.mrb[0].mxu0
    %v672 = vadd.f32 0.0, %v671
    %v673 = vpop.f32.mrb[0].mxu0
    %v674 = vpop.f32.mrb[0].mxu0
    %v675 = vadd.f32 0.0, %v674
    %v676 = vpop.f32.mrb[0].mxu0
    %677 = vmatprep.mubr.bf16.mxu0 0
    %678 = vmatmul.mubr.bf16.gmra.mrb[0].mxu0 %v146
    %v679 = vpop.f32.mrb[0].mxu0
    %v680 = vadd.f32 0.0, %v679
    %v681 = vpop.f32.mrb[0].mxu0
    %v682 = vpop.f32.mrb[0].mxu0
    %v683 = vadd.f32 0.0, %v682
    %v684 = vpop.f32.mrb[0].mxu0
    %685 = vdwg.mxu0
    %v686 = vrot.slane %v400, 1
    %v687 = vrot.slane %v404, 1
    %v688 = vrot.slane %v410, 1
    %v689 = vrot.slane %v414, 1
    %v690 = vrot.slane %v420, 1
    %v691 = vrot.slane %v424, 1
    %v692 = vrot.slane %v430, 1
    %v693 = vrot.slane %v434, 1
    %v694 = vrot.slane %v440, 1
    %v695 = vrot.slane %v444, 1
    %v696 = vrot.slane %v450, 1
    %v697 = vrot.slane %v454, 1
    %v698 = vrot.slane %v460, 1
    %v699 = vrot.slane %v464, 1
    %v700 = vrot.slane %v470, 1
    %v701 = vrot.slane %v474, 1
    %v702 = vadd.f32 %v398, %v686
    %v703 = vadd.f32 %v402, %v687
    %v704 = vadd.f32 %v408, %v688
    %v705 = vadd.f32 %v412, %v689
    %v706 = vadd.f32 %v418, %v690
    %v707 = vadd.f32 %v422, %v691
    %v708 = vadd.f32 %v428, %v692
    %v709 = vadd.f32 %v432, %v693
    %v710 = vadd.f32 %v438, %v694
    %v711 = vadd.f32 %v442, %v695
    %v712 = vadd.f32 %v448, %v696
    %v713 = vadd.f32 %v452, %v697
    %v714 = vadd.f32 %v458, %v698
    %v715 = vadd.f32 %v462, %v699
    %v716 = vadd.f32 %v468, %v700
    %v717 = vadd.f32 %v472, %v701
    %v718 = vrot.slane %v511, 2
    %v719 = vrot.slane %v515, 2
    %v720 = vrot.slane %v521, 2
    %v721 = vrot.slane %v525, 2
    %v722 = vrot.slane %v531, 2
    %v723 = vrot.slane %v535, 2
    %v724 = vrot.slane %v541, 2
    %v725 = vrot.slane %v545, 2
    %v726 = vrot.slane %v551, 2
    %v727 = vrot.slane %v555, 2
    %v728 = vrot.slane %v561, 2
    %v729 = vrot.slane %v565, 2
    %v730 = vrot.slane %v571, 2
    %v731 = vrot.slane %v575, 2
    %v732 = vrot.slane %v581, 2
    %v733 = vrot.slane %v585, 2
    %v734 = vadd.f32 %v702, %v718
    %v735 = vadd.f32 %v703, %v719
    %v736 = vadd.f32 %v704, %v720
    %v737 = vadd.f32 %v705, %v721
    %v738 = vadd.f32 %v706, %v722
    %v739 = vadd.f32 %v707, %v723
    %v740 = vadd.f32 %v708, %v724
    %v741 = vadd.f32 %v709, %v725
    %v742 = vadd.f32 %v710, %v726
    %v743 = vadd.f32 %v711, %v727
    %v744 = vadd.f32 %v712, %v728
    %v745 = vadd.f32 %v713, %v729
    %v746 = vadd.f32 %v714, %v730
    %v747 = vadd.f32 %v715, %v731
    %v748 = vadd.f32 %v716, %v732
    %v749 = vadd.f32 %v717, %v733
    %v750 = vrot.slane %v513, 3
    %v751 = vrot.slane %v517, 3
    %v752 = vrot.slane %v523, 3
    %v753 = vrot.slane %v527, 3
    %v754 = vrot.slane %v533, 3
    %v755 = vrot.slane %v537, 3
    %v756 = vrot.slane %v543, 3
    %v757 = vrot.slane %v547, 3
    %v758 = vrot.slane %v553, 3
    %v759 = vrot.slane %v557, 3
    %v760 = vrot.slane %v563, 3
    %v761 = vrot.slane %v567, 3
    %v762 = vrot.slane %v573, 3
    %v763 = vrot.slane %v577, 3
    %v764 = vrot.slane %v583, 3
    %v765 = vrot.slane %v587, 3
    %v766 = vadd.f32 %v734, %v750
    %v767 = vadd.f32 %v735, %v751
    %v768 = vadd.f32 %v736, %v752
    %v769 = vadd.f32 %v737, %v753
    %v770 = vadd.f32 %v738, %v754
    %v771 = vadd.f32 %v739, %v755
    %v772 = vadd.f32 %v740, %v756
    %v773 = vadd.f32 %v741, %v757
    %v774 = vadd.f32 %v742, %v758
    %v775 = vadd.f32 %v743, %v759
    %v776 = vadd.f32 %v744, %v760
    %v777 = vadd.f32 %v745, %v761
    %v778 = vadd.f32 %v746, %v762
    %v779 = vadd.f32 %v747, %v763
    %v780 = vadd.f32 %v748, %v764
    %v781 = vadd.f32 %v749, %v765
    %v782 = vrot.slane %v624, 4
    %v783 = vrot.slane %v627, 4
    %v784 = vrot.slane %v632, 4
    %v785 = vrot.slane %v635, 4
    %v786 = vrot.slane %v640, 4
    %v787 = vrot.slane %v643, 4
    %v788 = vrot.slane %v648, 4
    %v789 = vrot.slane %v651, 4
    %v790 = vrot.slane %v656, 4
    %v791 = vrot.slane %v659, 4
    %v792 = vrot.slane %v664, 4
    %v793 = vrot.slane %v667, 4
    %v794 = vrot.slane %v672, 4
    %v795 = vrot.slane %v675, 4
    %v796 = vrot.slane %v680, 4
    %v797 = vrot.slane %v683, 4
    %v798 = vadd.f32 %v766, %v782
    %v799 = vadd.f32 %v767, %v783
    %v800 = vadd.f32 %v768, %v784
    %v801 = vadd.f32 %v769, %v785
    %v802 = vadd.f32 %v770, %v786
    %v803 = vadd.f32 %v771, %v787
    %v804 = vadd.f32 %v772, %v788
    %v805 = vadd.f32 %v773, %v789
    %v806 = vadd.f32 %v774, %v790
    %v807 = vadd.f32 %v775, %v791
    %v808 = vadd.f32 %v776, %v792
    %v809 = vadd.f32 %v777, %v793
    %v810 = vadd.f32 %v778, %v794
    %v811 = vadd.f32 %v779, %v795
    %v812 = vadd.f32 %v780, %v796
    %v813 = vadd.f32 %v781, %v797
    %v814 = vld [vmem:[%s2] sm:$0x1]
    %v815 = vlaneseq
    %v816 = vshrl.u32 %v815, 7
    %v817 = vsub.s32 0, %v816
    %v818 = vrot.slane %v814, %v817
    %v819 = vadd.f32 %v798, %v818
    %v820 = vadd.f32 %v799, %v818
    %v821 = vadd.f32 %v800, %v818
    %v822 = vadd.f32 %v801, %v818
    %v823 = vadd.f32 %v802, %v818
    %v824 = vadd.f32 %v803, %v818
    %v825 = vadd.f32 %v804, %v818
    %v826 = vadd.f32 %v805, %v818
    %v827 = vadd.f32 %v806, %v818
    %v828 = vadd.f32 %v807, %v818
    %v829 = vadd.f32 %v808, %v818
    %v830 = vadd.f32 %v809, %v818
    %v831 = vadd.f32 %v810, %v818
    %v832 = vadd.f32 %v811, %v818
    %v833 = vadd.f32 %v812, %v818
    %v834 = vadd.f32 %v813, %v818
    %v835 = vmax.f32 %v819, 0.0
    %v836 = vmax.f32 %v820, 0.0
    %v837 = vmax.f32 %v821, 0.0
    %v838 = vmax.f32 %v822, 0.0
    %v839 = vmax.f32 %v823, 0.0
    %v840 = vmax.f32 %v824, 0.0
    %v841 = vmax.f32 %v825, 0.0
    %v842 = vmax.f32 %v826, 0.0
    %v843 = vmax.f32 %v827, 0.0
    %v844 = vmax.f32 %v828, 0.0
    %v845 = vmax.f32 %v829, 0.0
    %v846 = vmax.f32 %v830, 0.0
    %v847 = vmax.f32 %v831, 0.0
    %v848 = vmax.f32 %v832, 0.0
    %v849 = vmax.f32 %v833, 0.0
    %v850 = vmax.f32 %v834, 0.0
    %v851 = vlaneseq
    %v852 = vshrl.u32 %v851, 7
    %v853 = vlaneseq
    %v854 = vand.u32 %v853, 127
    %vm855 = vcmp.ge.s32.totalorder %v854, 0
    %vm856 = vcmp.lt.s32.totalorder %v854, 16
    %vm857 = vmand %vm855, %vm856
    %v858 = vsel %vm857, 1, 0
    %vm859 = vcmp.ge.s32.totalorder %v854, 16
    %vm860 = vcmp.lt.s32.totalorder %v854, 32
    %vm861 = vmand %vm859, %vm860
    %v862 = vsel %vm861, 2, %v858
    %vm863 = vcmp.ge.s32.totalorder %v854, 32
    %vm864 = vcmp.lt.s32.totalorder %v854, 48
    %vm865 = vmand %vm863, %vm864
    %v866 = vsel %vm865, 3, %v862
    %vm867 = vcmp.ge.s32.totalorder %v854, 48
    %vm868 = vcmp.lt.s32.totalorder %v854, 64
    %vm869 = vmand %vm867, %vm868
    %v870 = vsel %vm869, 4, %v866
    %vm871 = vcmp.ge.s32.totalorder %v854, 64
    %vm872 = vcmp.lt.s32.totalorder %v854, 80
    %vm873 = vmand %vm871, %vm872
    %v874 = vsel %vm873, 5, %v870
    %v875 = vsub.s32 8, %v874
    %vm876 = vcmp.le.s32.totalorder %v852, %v875
    %vm877 = vmand %vm876, %vm872
    %v878 = vsel %vm877, 1, 0
    %vm879 = vcmp.eq.s32.totalorder %v878, 1
    %v880 = vsel %vm879, %v835, 0.0
    %v881 = vsel %vm879, %v836, 0.0
    %v882 = vsel %vm879, %v837, 0.0
    %v883 = vsel %vm879, %v838, 0.0
    %v884 = vsel %vm879, %v839, 0.0
    %v885 = vsel %vm879, %v840, 0.0
    %v886 = vsel %vm879, %v841, 0.0
    %v887 = vsel %vm879, %v842, 0.0
    %v888 = vsel %vm879, %v843, 0.0
    %v889 = vsel %vm879, %v844, 0.0
    %v890 = vsel %vm879, %v845, 0.0
    %v891 = vsel %vm879, %v846, 0.0
    %v892 = vsel %vm879, %v847, 0.0
    %v893 = vsel %vm879, %v848, 0.0
    %v894 = vsel %vm879, %v849, 0.0
    %v895 = vsel %vm879, %v850, 0.0
    %v896 = vrot.slane %v880, 4
    %v897 = vmax.f32 %v880, %v896
    %v898 = vrot.slane %v897, 2
    %v899 = vmax.f32 %v897, %v898
    %v900 = vrot.slane %v899, 1
    %v901 = vmax.f32 %v899, %v900
    %v902 = vrot.slane %v881, 4
    %v903 = vmax.f32 %v881, %v902
    %v904 = vrot.slane %v903, 2
    %v905 = vmax.f32 %v903, %v904
    %v906 = vrot.slane %v905, 1
    %v907 = vmax.f32 %v905, %v906
    %v908 = vrot.slane %v882, 4
    %v909 = vmax.f32 %v882, %v908
    %v910 = vrot.slane %v909, 2
    %v911 = vmax.f32 %v909, %v910
    %v912 = vrot.slane %v911, 1
    %v913 = vmax.f32 %v911, %v912
    %v914 = vrot.slane %v883, 4
    %v915 = vmax.f32 %v883, %v914
    %v916 = vrot.slane %v915, 2
    %v917 = vmax.f32 %v915, %v916
    %v918 = vrot.slane %v917, 1
    %v919 = vmax.f32 %v917, %v918
    %v920 = vrot.slane %v884, 4
    %v921 = vmax.f32 %v884, %v920
    %v922 = vrot.slane %v921, 2
    %v923 = vmax.f32 %v921, %v922
    %v924 = vrot.slane %v923, 1
    %v925 = vmax.f32 %v923, %v924
    %v926 = vrot.slane %v885, 4
    %v927 = vmax.f32 %v885, %v926
    %v928 = vrot.slane %v927, 2
    %v929 = vmax.f32 %v927, %v928
    %v930 = vrot.slane %v929, 1
    %v931 = vmax.f32 %v929, %v930
    %v932 = vrot.slane %v886, 4
    %v933 = vmax.f32 %v886, %v932
    %v934 = vrot.slane %v933, 2
    %v935 = vmax.f32 %v933, %v934
    %v936 = vrot.slane %v935, 1
    %v937 = vmax.f32 %v935, %v936
    %v938 = vrot.slane %v887, 4
    %v939 = vmax.f32 %v887, %v938
    %v940 = vrot.slane %v939, 2
    %v941 = vmax.f32 %v939, %v940
    %v942 = vrot.slane %v941, 1
    %v943 = vmax.f32 %v941, %v942
    %v944 = vrot.slane %v888, 4
    %v945 = vmax.f32 %v888, %v944
    %v946 = vrot.slane %v945, 2
    %v947 = vmax.f32 %v945, %v946
    %v948 = vrot.slane %v947, 1
    %v949 = vmax.f32 %v947, %v948
    %v950 = vrot.slane %v889, 4
    %v951 = vmax.f32 %v889, %v950
    %v952 = vrot.slane %v951, 2
    %v953 = vmax.f32 %v951, %v952
    %v954 = vrot.slane %v953, 1
    %v955 = vmax.f32 %v953, %v954
    %v956 = vrot.slane %v890, 4
    %v957 = vmax.f32 %v890, %v956
    %v958 = vrot.slane %v957, 2
    %v959 = vmax.f32 %v957, %v958
    %v960 = vrot.slane %v959, 1
    %v961 = vmax.f32 %v959, %v960
    %v962 = vrot.slane %v891, 4
    %v963 = vmax.f32 %v891, %v962
    %v964 = vrot.slane %v963, 2
    %v965 = vmax.f32 %v963, %v964
    %v966 = vrot.slane %v965, 1
    %v967 = vmax.f32 %v965, %v966
    %v968 = vrot.slane %v892, 4
    %v969 = vmax.f32 %v892, %v968
    %v970 = vrot.slane %v969, 2
    %v971 = vmax.f32 %v969, %v970
    %v972 = vrot.slane %v971, 1
    %v973 = vmax.f32 %v971, %v972
    %v974 = vrot.slane %v893, 4
    %v975 = vmax.f32 %v893, %v974
    %v976 = vrot.slane %v975, 2
    %v977 = vmax.f32 %v975, %v976
    %v978 = vrot.slane %v977, 1
    %v979 = vmax.f32 %v977, %v978
    %v980 = vrot.slane %v894, 4
    %v981 = vmax.f32 %v894, %v980
    %v982 = vrot.slane %v981, 2
    %v983 = vmax.f32 %v981, %v982
    %v984 = vrot.slane %v983, 1
    %v985 = vmax.f32 %v983, %v984
    %v986 = vrot.slane %v895, 4
    %v987 = vmax.f32 %v895, %v986
    %v988 = vrot.slane %v987, 2
    %v989 = vmax.f32 %v987, %v988
    %v990 = vrot.slane %v989, 1
    %v991 = vmax.f32 %v989, %v990
    %v992 = vld [vmem:[%s2 + $0x1] sm:$0x1]
    %v993 = vlaneseq
    %v994 = vshrl.u32 %v993, 7
    %v995 = vsub.s32 0, %v994
    %v996 = vrot.slane %v992, %v995
    %v997 = vmul.f32 %v901, %v996
    %v998 = vmul.f32 %v907, %v996
    %v999 = vmul.f32 %v913, %v996
    %v1000 = vmul.f32 %v919, %v996
    %v1001 = vmul.f32 %v925, %v996
    %v1002 = vmul.f32 %v931, %v996
    %v1003 = vmul.f32 %v937, %v996
    %v1004 = vmul.f32 %v943, %v996
    %v1005 = vmul.f32 %v949, %v996
    %v1006 = vmul.f32 %v955, %v996
    %v1007 = vmul.f32 %v961, %v996
    %v1008 = vmul.f32 %v967, %v996
    %v1009 = vmul.f32 %v973, %v996
    %v1010 = vmul.f32 %v979, %v996
    %v1011 = vmul.f32 %v985, %v996
    %v1012 = vmul.f32 %v991, %v996
    %v1029 = vrot.slane %v998, 7
    %vm1030 = vcmask 1041409
    %v1031 = vsel %vm1030, %v1029, %v997
    %v1032 = vrot.slane %v999, 6
    %vm1033 = vcmask 1042434
    %v1034 = vsel %vm1033, %v1032, %v1031
    %v1035 = vrot.slane %v1000, 5
    %vm1036 = vcmask 1043459
    %v1037 = vsel %vm1036, %v1035, %v1034
    %v1038 = vrot.slane %v1001, 4
    %vm1039 = vcmask 1044484
    %v1040 = vsel %vm1039, %v1038, %v1037
    %v1041 = vrot.slane %v1002, 3
    %vm1042 = vcmask 1045509
    %v1043 = vsel %vm1042, %v1041, %v1040
    %v1044 = vrot.slane %v1003, 2
    %vm1045 = vcmask 1046534
    %v1046 = vsel %vm1045, %v1044, %v1043
    %v1047 = vrot.slane %v1004, 1
    %vm1048 = vcmask 1047559
    %v1049 = vsel %vm1048, %v1047, %v1046
    %v1050 = vrot.slane %v1006, 7
    %v1051 = vsel %vm1030, %v1050, %v1005
    %v1052 = vrot.slane %v1007, 6
    %v1053 = vsel %vm1033, %v1052, %v1051
    %v1054 = vrot.slane %v1008, 5
    %v1055 = vsel %vm1036, %v1054, %v1053
    %v1056 = vrot.slane %v1009, 4
    %v1057 = vsel %vm1039, %v1056, %v1055
    %v1058 = vrot.slane %v1010, 3
    %v1059 = vsel %vm1042, %v1058, %v1057
    %v1060 = vrot.slane %v1011, 2
    %v1061 = vsel %vm1045, %v1060, %v1059
    %v1062 = vrot.slane %v1012, 1
    %v1063 = vsel %vm1048, %v1062, %v1061
    %1066 = vadd.xlane.f32.xlu0 %v1049
    %v1067 = vpop.xlane.xlu0 %1066
    %1068 = vadd.xlane.f32.xlu0 %v1063
    %v1069 = vpop.xlane.xlu0 %1068
    %v1070 = vld [vmem:[%s2 + $0x2] sm:$0x1]
    %v1071 = vlaneseq
    %v1072 = vshrl.u32 %v1071, 7
    %v1073 = vsub.s32 0, %v1072
    %v1074 = vrot.slane %v1070, %v1073
    %v1075 = vadd.f32 %v1067, %v1074
    %v1076 = vadd.f32 %v1069, %v1074
    %v1077 = vxor.u32 %v1075, 2147483648
    %v1078 = vxor.u32 %v1076, 2147483648
    %v1079 = vmul.f32 %v1077, 1.442695
    %v1080 = vpow.pop %v1079
    %v1081 = vmul.f32 %v1078, 1.442695
    %v1082 = vpow.pop %v1081
    %v1083 = vadd.f32 %v1080, 1.0
    %v1084 = vadd.f32 %v1082, 1.0
    %v1085 = vrcp.pop %v1083
    %v1086 = vmul.f32 1.0, %v1085
    %v1087 = vrcp.pop %v1084
    %v1088 = vmul.f32 1.0, %v1087
    %vm1089 = vcmask 7168
    %1090 = vst.msk [vmem:[%s3] sm:$0xff] %vm1089, %v1086
    %1091 = vst.msk [vmem:[%s3 + $0x8] sm:$0xff] %vm1089, %v1088
    // Predicated region
    $region22: #{tpu_custom_call.1} parent=1 // pred_check
      _
    $region23: #{tpu_custom_call.1} parent=1 // pred_check_branch
      %1093 = sbr.rel (0) target = $region25
    $region24: #{tpu_custom_call.1} parent=1 // pred_region
      _
    $region25: #{tpu_custom_call.1} parent=1 // pred_fallthru
      _
    // Predicated region
    $region26: #{tpu_custom_call.1} parent=1 // pred_check
      _
    $region27: #{tpu_custom_call.1} parent=1 // pred_check_branch
      %1095 = sbr.rel (0) target = $region29
    $region28: #{tpu_custom_call.1} parent=1 // pred_region
      _
    $region29: #{tpu_custom_call.1} parent=1 // pred_fallthru
      _
    %1096 = vsyncpa [#allocation3], 1
    %1097 = vsyncpa [#allocation5], 1

</llo_original>
